<compile_context>
chip_gen: v5e
topology: v5e:2x2
jax: 0.10.0
libtpu: 0.0.40
codegen_flags: <defaults>
</compile_context>

<pallas_src>
import functools
import numpy as np
import jax
import jax.numpy as jnp
from jax.experimental import pallas as pl
from jax.experimental.pallas import tpu as pltpu


_VMEM_LIMIT = 40 * 1024 * 1024          # explicit budget, safe on v5e/v6e/v7x
_BN_EPS = 1e-5


def _cdiv(a, b):
    return (a + b - 1) // b


def _round_up(a, b):
    return _cdiv(a, b) * b


def _pick_tile(dim, pref, align):
    """Largest legal block size <= pref: either the full extent, or a multiple of
    `align` that divides `dim` exactly, so no operand padding is ever needed."""
    if dim <= pref:
        return dim
    t = (pref // align) * align
    while t >= align:
        if dim % t == 0:
            return t
        t -= align
    return dim


# ---------------------------------------------------------------------------
# Pallas kernel 1: tiled matmul with fused bias (+residual) (+ReLU) epilogue
# ---------------------------------------------------------------------------

def _mm_kernel(*refs, relu, has_res, multi_k):
    if multi_k:
        if has_res:
            a_ref, w_ref, b_ref, r_ref, o_ref, acc_ref = refs
        else:
            a_ref, w_ref, b_ref, o_ref, acc_ref = refs
            r_ref = None
        k = pl.program_id(2)
        d = jnp.dot(a_ref[...], w_ref[...], preferred_element_type=jnp.float32)

        @pl.when(k == 0)
        def _():
            acc_ref[...] = d            # init with first dot (no zero-fill)

        @pl.when(k > 0)
        def _():
            acc_ref[...] += d

        @pl.when(k == pl.num_programs(2) - 1)
        def _():
            out = acc_ref[...] + b_ref[...]
            if has_res:
                out = out + r_ref[...].astype(jnp.float32)
            if relu:
                out = jnp.maximum(out, 0.0)
            o_ref[...] = out.astype(o_ref.dtype)
    else:
        if has_res:
            a_ref, w_ref, b_ref, r_ref, o_ref = refs
        else:
            a_ref, w_ref, b_ref, o_ref = refs
            r_ref = None
        out = jnp.dot(a_ref[...], w_ref[...],
                      preferred_element_type=jnp.float32) + b_ref[...]
        if has_res:
            out = out + r_ref[...].astype(jnp.float32)
        if relu:
            out = jnp.maximum(out, 0.0)
        o_ref[...] = out.astype(o_ref.dtype)


def matmul_bias(a, w, bias, *, relu, residual=None, out_dtype=jnp.bfloat16):
    """out = maybe_relu(a @ w + bias [+ residual]).

    a:(M,K) bf16, w:(K,N) bf16 (BN scale pre-folded, pre-transposed),
    bias:(1,N) f32, residual:(M,N) bf16 or None.
    """
    M, K = a.shape
    K2, N = w.shape
    assert K2 == K

    # Adaptive tiles: small-M (deep) layers get full-extent N/K so each conv is
    # only 1-2 grid steps; large-M layers keep moderate tiles for pipelining.
    if M <= 256:
        tn_pref, tk_pref = 2048, 4608
    else:
        tn_pref, tk_pref = 256, 512
    tm = _pick_tile(M, 256, 16)          # 16: bf16 packs 16 rows per vreg group
    tn = _pick_tile(N, tn_pref, 128)
    tk = _pick_tile(K, tk_pref, 128)
    # v7x has 2 TensorCores: keep >=2 blocks on a parallel grid axis.
    if (M // tm) * (N // tn) < 2 and tn % 256 == 0:
        tn //= 2

    nk = K // tk
    multi_k = nk > 1
    has_res = residual is not None

    if multi_k:
        in_specs = [
            pl.BlockSpec((tm, tk), lambda i, j, k: (i, k)),
            pl.BlockSpec((tk, tn), lambda i, j, k: (k, j)),
            pl.BlockSpec((1, tn), lambda i, j, k: (0, j)),
        ]
        if has_res:
            in_specs.append(pl.BlockSpec((tm, tn), lambda i, j, k: (i, j)))
        out_specs = pl.BlockSpec((tm, tn), lambda i, j, k: (i, j))
        grid = (M // tm, N // tn, nk)
        scratch = [pltpu.VMEM((tm, tn), jnp.float32)]
        sem = ("parallel", "parallel", "arbitrary")
    else:
        in_specs = [
            pl.BlockSpec((tm, tk), lambda i, j: (i, 0)),
            pl.BlockSpec((tk, tn), lambda i, j: (0, j)),
            pl.BlockSpec((1, tn), lambda i, j: (0, j)),
        ]
        if has_res:
            in_specs.append(pl.BlockSpec((tm, tn), lambda i, j: (i, j)))
        out_specs = pl.BlockSpec((tm, tn), lambda i, j: (i, j))
        grid = (M // tm, N // tn)
        scratch = []
        sem = ("parallel", "parallel")

    args = [a, w, bias] + ([residual] if has_res else [])
    cost = pl.CostEstimate(
        flops=int(2 * M * N * K), transcendentals=0,
        bytes_accessed=int(a.size * 2 + w.size * 2
                           + M * N * jnp.dtype(out_dtype).itemsize))

    return pl.pallas_call(
        functools.partial(_mm_kernel, relu=relu, has_res=has_res,
                          multi_k=multi_k),
        out_shape=jax.ShapeDtypeStruct((M, N), out_dtype),
        grid_spec=pltpu.PrefetchScalarGridSpec(
            num_scalar_prefetch=0, grid=grid,
            in_specs=in_specs, out_specs=out_specs, scratch_shapes=scratch),
        compiler_params=pltpu.CompilerParams(
            dimension_semantics=sem, vmem_limit_bytes=_VMEM_LIMIT),
        cost_estimate=cost,
    )(*args)


# ---------------------------------------------------------------------------
# Pallas kernel 2: stride-1 KxK conv with the taps folded into the kernel
# (no im2col patch materialization in HBM).
#
# The padded activation is flattened to rows r = n*Hp*Wp + i*Wp + j and kept
# fully resident in VMEM; for tap (di,dj) the contribution to output row r is
# a_flat[r + di*Wp + dj, :] @ w[(di*kw+dj)*C:(di*kw+dj+1)*C, :].  All rows with
# i < oh, j < ow are exact conv outputs; the frame-border garbage rows are
# sliced away outside the kernel.
# ---------------------------------------------------------------------------

def _conv_s1_kernel(a_ref, w_ref, b_ref, o_ref, acc_ref, *,
                    tap_offsets, c_in, tm, relu):
    row0 = pl.multiple_of(pl.program_id(0) * tm, 8)
    for t, off in enumerate(tap_offsets):          # static unrolled tap loop
        a = a_ref[pl.ds(row0 + off, tm), :]        # (tm, C) bf16, shifted rows
        wt = w_ref[t * c_in:(t + 1) * c_in, :]     # (C, tn) bf16
        d = jnp.dot(a, wt, preferred_element_type=jnp.float32)
        if t == 0:
            acc_ref[...] = d                       # init with first dot
        else:
            acc_ref[...] += d
    out = acc_ref[...] + b_ref[...]
    if relu:
        out = jnp.maximum(out, 0.0)
    o_ref[...] = out.astype(o_ref.dtype)


def _conv_s1(x, w, b, *, kh, kw, pad, relu):
    """Stride-1 KxK conv + folded BN (+ReLU) with taps folded into the kernel.

    x: (N,H,W,C) bf16, w: (kh*kw*C, Cout) bf16, b: (1, Cout) f32.
    """
    N, H, W, Cin = x.shape
    Cout = w.shape[1]
    xp = jnp.pad(x, ((0, 0), (pad, pad), (pad, pad), (0, 0)))
    Hp, Wp = H + 2 * pad, W + 2 * pad
    oh, ow = Hp - kh + 1, Wp - kw + 1
    m_frame = N * Hp * Wp
    tap_off = tuple(di * Wp + dj for di in range(kh) for dj in range(kw))
    max_off = tap_off[-1]

    tm = _round_up(m_frame, 8) if m_frame <= 256 else 256
    m_tiles = _cdiv(m_frame, tm)
    m_out = m_tiles * tm
    tn = _pick_tile(Cout, 2048, 128)
    if m_tiles * (Cout // tn) < 2 and tn % 256 == 0:
        tn //= 2                                    # keep 2 blocks for v7x's 2 TCs

    mp = _round_up(m_out + max_off, 8)              # row head-room for tap shifts
    a = jnp.pad(xp.reshape(m_frame, Cin), ((0, mp - m_frame), (0, 0)))

    cost = pl.CostEstimate(
        flops=int(2 * m_out * Cout * Cin * kh * kw), transcendentals=0,
        bytes_accessed=int(a.size * 2 + w.size * 2 + m_out * Cout * 2))

    out = pl.pallas_call(
        functools.partial(_conv_s1_kernel, tap_offsets=tap_off, c_in=Cin,
                          tm=tm, relu=relu),
        out_shape=jax.ShapeDtypeStruct((m_out, Cout), jnp.bfloat16),
        grid_spec=pltpu.PrefetchScalarGridSpec(
            num_scalar_prefetch=0,
            grid=(m_tiles, Cout // tn),
            in_specs=[
                pl.BlockSpec((mp, Cin), lambda i, j: (0, 0)),       # whole act.
                pl.BlockSpec((kh * kw * Cin, tn), lambda i, j: (0, j)),
                pl.BlockSpec((1, tn), lambda i, j: (0, j)),
            ],
            out_specs=pl.BlockSpec((tm, tn), lambda i, j: (i, j)),
            scratch_shapes=[pltpu.VMEM((tm, tn), jnp.float32)],
        ),
        compiler_params=pltpu.CompilerParams(
            dimension_semantics=("parallel", "parallel"),
            vmem_limit_bytes=_VMEM_LIMIT),
        cost_estimate=cost,
    )(a, w, b)

    # discard frame-border garbage rows, keep valid conv outputs
    return out[:m_frame].reshape(N, Hp, Wp, Cout)[:, :oh, :ow, :]


# ---------------------------------------------------------------------------
# Conv / pooling glue
# ---------------------------------------------------------------------------

def _extract_patches(x, kh, kw, stride, pad):
    """im2col fallback (only used for strided kh>1 convs: conv1 + 3 c2 convs)."""
    if pad > 0:
        x = jnp.pad(x, ((0, 0), (pad, pad), (pad, pad), (0, 0)))
    N, H, W, C = x.shape
    oh = (H - kh) // stride + 1
    ow = (W - kw) // stride + 1
    cols = [x[:, i:i + oh * stride:stride, j:j + ow * stride:stride, :]
            for i in range(kh) for j in range(kw)]
    patches = jnp.concatenate(cols, axis=-1)            # ordering (ki, kj, c)
    return patches.reshape(N * oh * ow, kh * kw * C), (N, oh, ow)


@functools.partial(jax.jit, static_argnames=("kh", "kw", "stride", "pad", "relu"))
def _conv_bn_jit(x, w, b, residual, *, kh, kw, stride, pad, relu):
    Cout = w.shape[1]
    if kh == 1 and kw == 1:
        xs = x if stride == 1 else x[:, ::stride, ::stride, :]
        n, oh, ow, cin = xs.shape
        a = xs.reshape(n * oh * ow, cin)
        res2d = None if residual is None else residual.reshape(n * oh * ow, Cout)
        out = matmul_bias(a, w, b, relu=relu, residual=res2d)
        return out.reshape(n, oh, ow, Cout)
    if stride == 1:
        assert residual is None
        return _conv_s1(x, w, b, kh=kh, kw=kw, pad=pad, relu=relu)
    # strided kh>1 conv: im2col fallback (conv1 7x7/s2 + 3 downsampling 3x3/s2)
    patches, (n, oh, ow) = _extract_patches(x, kh, kw, stride, pad)
    kdim = w.shape[0]
    if patches.shape[1] != kdim:        # conv1 weight K pre-padded to 128-multiple
        patches = jnp.pad(patches, ((0, 0), (0, kdim - patches.shape[1])))
    res2d = None if residual is None else residual.reshape(n * oh * ow, Cout)
    out = matmul_bias(patches, w, b, relu=relu, residual=res2d)
    return out.reshape(n, oh, ow, Cout)


def conv_bn(x, layer, *, kh, kw, stride, pad, relu, residual=None):
    return _conv_bn_jit(x, layer["w"], layer["b"], residual,
                        kh=kh, kw=kw, stride=stride, pad=pad, relu=relu)


@functools.partial(jax.jit, static_argnames=("k", "stride", "pad"))
def maxpool2d(x, k=3, stride=2, pad=1):
    # small-window reduction kept in plain JAX (hot paths are the matmuls)
    x = jnp.pad(x, ((0, 0), (pad, pad), (pad, pad), (0, 0)),
                constant_values=-jnp.inf)
    N, H, W, C = x.shape
    oh = (H - k) // stride + 1
    ow = (W - k) // stride + 1
    out = None
    for i in range(k):
        for j in range(k):
            v = x[:, i:i + oh * stride:stride, j:j + ow * stride:stride, :]
            out = v if out is None else jnp.maximum(out, v)
    return out


@jax.jit
def _head_jit(x_nhwc, fc_w, fc_b):
    pooled = jnp.mean(x_nhwc.astype(jnp.float32), axis=(1, 2))   # avgpool + view
    return matmul_bias(pooled.astype(jnp.bfloat16), fc_w, fc_b,
                       relu=False, out_dtype=jnp.float32)


# ---------------------------------------------------------------------------
# ResNet-101 parameters (deterministic synthetic init, BN folded) and forward
# ---------------------------------------------------------------------------

_RESNET101_CFG = [(64, 3, 1), (128, 4, 2), (256, 23, 2), (512, 3, 2)]


def _fold_conv(w_pt, gamma, k_pad_to=None):
    """Fold eval-mode BN (mean=0, var=1, beta=0) into matmul-layout bf16 weights."""
    cout, cin, kh, kw = w_pt.shape
    scale = gamma / np.sqrt(1.0 + _BN_EPS)
    wm = jnp.transpose(w_pt, (2, 3, 1, 0)).reshape(kh * kw * cin, cout) * scale
    if k_pad_to is not None and k_pad_to > wm.shape[0]:
        wm = jnp.pad(wm, ((0, k_pad_to - wm.shape[0]), (0, 0)))
    bias = jnp.zeros((1, cout), jnp.float32)     # beta - mean*scale == 0
    return {"w": wm.astype(jnp.bfloat16), "b": bias}


def init_resnet101_params(key, n_class):
    counter = [0]

    def nk():
        counter[0] += 1
        return jax.random.fold_in(key, counter[0])

    def conv_w(cout, cin, kh, kw):
        std = np.sqrt(2.0 / (cin * kh * kw))
        return jax.random.normal(nk(), (cout, cin, kh, kw), jnp.float32) * std

    # conv1 im2col K = 147 -> padded to 256 (lane-aligned MXU passes)
    params = {"conv1": _fold_conv(conv_w(64, 3, 7, 7), gamma=1.0,
                                  k_pad_to=_round_up(147, 128))}

    layers = []
    in_planes = 64
    for planes, nblocks, _ in _RESNET101_CFG:
        blocks = []
        for b in range(nblocks):
            blk = {
                "c1": _fold_conv(conv_w(planes, in_planes, 1, 1), 1.0),
                "c2": _fold_conv(conv_w(planes, planes, 3, 3), 1.0),
                # small gamma on the last BN keeps the 33-deep residual stack tame
                "c3": _fold_conv(conv_w(planes * 4, planes, 1, 1), 0.1),
            }
            if b == 0:
                blk["ds"] = _fold_conv(conv_w(planes * 4, in_planes, 1, 1), 1.0)
            blocks.append(blk)
            in_planes = planes * 4
        layers.append(blocks)
    params["layers"] = layers

    n_pad = _round_up(n_class, 128)
    fc_w = jax.random.normal(nk(), (n_class, 2048), jnp.float32) / np.sqrt(2048.0)
    params["fc"] = {
        "w": jnp.pad(fc_w.T, ((0, 0), (0, n_pad - n_class))).astype(jnp.bfloat16),
        "b": jnp.zeros((1, n_pad), jnp.float32),
    }
    return params


def bottleneck(x, blk, stride):
    out = conv_bn(x, blk["c1"], kh=1, kw=1, stride=1, pad=0, relu=True)
    out = conv_bn(out, blk["c2"], kh=3, kw=3, stride=stride, pad=1, relu=True)
    if "ds" in blk:
        identity = conv_bn(x, blk["ds"], kh=1, kw=1, stride=stride, pad=0,
                           relu=False)
    else:
        identity = x
    # conv3 + BN + residual add + ReLU fused into one Pallas matmul epilogue
    return conv_bn(out, blk["c3"], kh=1, kw=1, stride=1, pad=0, relu=True,
                   residual=identity)


def network_forward(params, x_nchw, n_class):
    """Equivalent of Network.forward: returns (feature, logits).

    feature: layer4 output, NCHW = (B, 2048, Hf, Wf), float32
    logits : (B, n_class), float32
    """
    x = jnp.transpose(x_nchw, (0, 2, 3, 1)).astype(jnp.bfloat16)   # NCHW -> NHWC
    x = conv_bn(x, params["conv1"], kh=7, kw=7, stride=2, pad=3, relu=True)
    x = maxpool2d(x, k=3, stride=2, pad=1)

    feature = None
    for li, (planes, nblocks, lstride) in enumerate(_RESNET101_CFG):
        blocks = params["layers"][li]
        for b in range(nblocks):
            s = lstride if b == 0 else 1
            x = bottleneck(x, blocks[b], s)
        if li == 3:
            feature = jnp.transpose(x, (0, 3, 1, 2)).astype(jnp.float32)

    logits = _head_jit(x, params["fc"]["w"], params["fc"]["b"])
    return feature, logits[:, :n_class]


# ---------------------------------------------------------------------------

if __name__ == "__main__":
    n_class = 10
    key = jax.random.PRNGKey(0)
    params = init_resnet101_params(jax.random.fold_in(key, 1), n_class)
    x = jax.random.normal(jax.random.fold_in(key, 2), (2, 3, 64, 64), jnp.float32)

    feature, logits = network_forward(params, x, n_class)
    jax.block_until_ready((feature, logits))

    assert feature.shape == (2, 2048, 2, 2), feature.shape
    assert logits.shape == (2, n_class), logits.shape
    assert bool(jnp.all(jnp.isfinite(feature))) and bool(jnp.all(jnp.isfinite(logits)))
    print("KERNEL_OK")
</pallas_src>

<mosaic_0001>
module attributes {stable_mosaic.version = 11 : i64} {
  func.func @_mm_kernel(%arg0: i32, %arg1: i32, %arg2: memref<256x256xbf16, #tpu.memory_space<vmem>>, %arg3: memref<256x64xbf16, #tpu.memory_space<vmem>>, %arg4: memref<1x64xf32, #tpu.memory_space<vmem>>, %arg5: memref<256x64xbf16, #tpu.memory_space<vmem>>) attributes {dimension_semantics = [#tpu.dimension_semantics<parallel>, #tpu.dimension_semantics<parallel>], iteration_bounds = array<i64: 8, 1>, scalar_prefetch = 0 : i64, scratch_operands = 0 : i64, tpu.core_type = #tpu.core_type<tc>, window_params = [{transform_indices = @transform_0, window_bounds = array<i64: 256, 256>}, {transform_indices = @transform_1, window_bounds = array<i64: 256, 64>}, {transform_indices = @transform_2, window_bounds = array<i64: 1, 64>}, {transform_indices = @transform_3, window_bounds = array<i64: 256, 64>}]} {
    %c0 = arith.constant 0 : index
    %c0_0 = arith.constant 0 : index
    %0 = vector.load %arg2[%c0, %c0_0] : memref<256x256xbf16, #tpu.memory_space<vmem>>, vector<256x256xbf16>
    %c0_1 = arith.constant 0 : index
    %c0_2 = arith.constant 0 : index
    %1 = vector.load %arg3[%c0_1, %c0_2] : memref<256x64xbf16, #tpu.memory_space<vmem>>, vector<256x64xbf16>
    %cst = arith.constant dense<0.000000e+00> : vector<256x64xf32>
    %2 = tpu.matmul %0, %1, %cst {dimension_numbers = #tpu.dot_dimension_numbers<[1], [0], [0], [1], [0, 0, 1, 1], [], []>} : vector<256x256xbf16>, vector<256x64xbf16>, vector<256x64xf32> -> vector<256x64xf32>
    %c0_3 = arith.constant 0 : index
    %c0_4 = arith.constant 0 : index
    %3 = vector.load %arg4[%c0_3, %c0_4] : memref<1x64xf32, #tpu.memory_space<vmem>>, vector<1x64xf32>
    %4 = vector.broadcast %3 : vector<1x64xf32> to vector<256x64xf32>
    %5 = arith.addf %2, %4 : vector<256x64xf32>
    %cst_5 = arith.constant 0.000000e+00 : f32
    %6 = vector.broadcast %cst_5 : f32 to vector<256x64xf32>
    %7 = arith.maximumf %5, %6 : vector<256x64xf32>
    %8 = arith.truncf %7 : vector<256x64xf32> to vector<256x64xbf16>
    %c0_6 = arith.constant 0 : index
    %c0_7 = arith.constant 0 : index
    %9 = vector.load %arg5[%c0_6, %c0_7] : memref<256x64xbf16, #tpu.memory_space<vmem>>, vector<256x64xbf16>
    tpu.vector_store %arg5[%c0_6, %c0_7], %8 {strides = array<i32>} : memref<256x64xbf16, #tpu.memory_space<vmem>>, vector<256x64xbf16>,
    return
  }
  func.func @transform_0(%arg0: i32, %arg1: i32) -> (i32, i32) {
    %c0_i32 = arith.constant 0 : i32
    %c0_i32_0 = arith.constant 0 : i32
    return %arg0, %c0_i32 : i32, i32
  }
  func.func @transform_1(%arg0: i32, %arg1: i32) -> (i32, i32) {
    %c0_i32 = arith.constant 0 : i32
    %c0_i32_0 = arith.constant 0 : i32
    return %c0_i32, %arg1 : i32, i32
  }
  func.func @transform_2(%arg0: i32, %arg1: i32) -> (i32, i32) {
    %c0_i32 = arith.constant 0 : i32
    %c0_i32_0 = arith.constant 0 : i32
    return %c0_i32, %arg1 : i32, i32
  }
  func.func @transform_3(%arg0: i32, %arg1: i32) -> (i32, i32) {
    %c0_i32 = arith.constant 0 : i32
    return %arg0, %arg1 : i32, i32
  }
}

</mosaic_0001>

<llo_original>
// kernel: _conv_bn_jit.1
$region0: #{_conv_bn_jit.1}
  #allocation0 [shape = 'u32[]', space=smem, size = 0x4, offset = 0x4, fixed_abs, tag = 'smem constant byte address 0x4 - core index']
  #allocation1 [shape = 'u32[72,128]{1,0:T(1,128)}', space=vmem, size = 0x9000, scoped, tag = 'internal scratch']
  %s0 = inlined_call_operand.vmem [shape: bf16[2048,256], index: 0, kind: input, shape index: {}]
  %s1 = inlined_call_operand.vmem [shape: bf16[256,64], index: 1, kind: input, shape index: {}]
  %s2 = inlined_call_operand.vmem [shape: f32[1,64], index: 2, kind: input, shape index: {}]
  %s3 = inlined_call_operand.hbm [shape: bf16[2048,64], index: 3, kind: output, shape index: {}]
  %s4 = sld [smem:[#allocation0]]
  $region45: #{_conv_bn_jit.1} parent=0
    _
  %s6 = ssub.s32 1, %s4
  %s7 = scalar_select 0, %s6, %s4
  $region1: #{_conv_bn_jit.1} parent=0
    #allocation2 [shape = 'u8[131072]{0}', space=vmem, size = 0x20000, scoped, tag = 'output window, operand 0']
    #allocation3 [shape = 's32[2]{0}', space=sflag, size = 0x8, scoped, tag = 'scoped memory for _conv_bn_jit.1']
    %8 = vsyncpa [#allocation3], 0
    %s9 = scalar_lea.sflag [#allocation3], 1
    %10 = vsyncpa %s9, 0
    loop: start=0, step=1, limit=10
    $region2: #{_conv_bn_jit.1} parent=1 // loop_pre_header
      _
    $region3: #{_conv_bn_jit.1} parent=1 // loop_header
      %s12 = sphi 0, %s16
      %p13 = scmp.ge.s32.totalorder %s12, 10
      %s19 = sphi 0, %s31
      %s20 = sphi 0, %s27
      %s21 = sphi 0, %s19
      %s22 = sphi 0, %s20
      %s23 = sphi 0, %s21
      %s24 = sphi 0, %s22
      %s34 = sphi 0, %s36
      %s37 = sphi 0, %s34
      %s38 = sphi 0, %s37
      %s54 = sphi 0, %s38
      %s60 = sphi 0, %s62
      %s63 = sphi 0, %s60
      %s64 = sphi 0, %s63
      %s80 = sphi 0, %s64
      %s86 = sphi 0, %s88
      %s89 = sphi 0, %s86
      %s90 = sphi 0, %s89
      %s106 = sphi 0, %s90
      %s114 = sphi 0, %s116
      %s117 = sphi 0, %s114
      %s118 = sphi 0, %s117
      %s134 = sphi 0, %s118
    $region4: #{_conv_bn_jit.1} parent=1 // loop_header_branch
      %15 = sbr.rel (%p13) target = $region8
    $region5: #{_conv_bn_jit.1} parent=1 // loop_body
      %s17 = ssub.s32 %s12, 1
      %s18 = ssub.s32 %s12, 2
      %s25 = sadd.s32 1, %s20
      %p26 = scmp.ge.s32.totalorder %s25, 1
      %s27 = scalar_select %p26, 0, %s25
      %s28 = sadd.s32 1, %s19
      %s29 = scalar_select %p26, %s28, %s19
      %p30 = scmp.ge.s32.totalorder %s29, 8
      %s31 = scalar_select %p30, 0, %s29
      %s32 = ssub.s32 %s19, %s31
      %p33 = scmp.eq.s32.totalorder %s32, 0
      %s35 = sadd.s32 %s34, 1
      %s36 = scalar_select %p33, %s34, %s35
      %p39 = pneg %p33
      %p40 = scmp.eq.s32.totalorder %s12, 7
      %p41 = por %p39, %p40
      %p42 = scmp.ne.s32.totalorder %s34, %s37
      %p43 = scmp.eq.s32.totalorder %s12, 0
      %p44 = por %p42, %p43
      %p45 = scmp.ne.s32.totalorder %s34, %s37
      %p46 = scmp.eq.s32.totalorder %s17, 7
      %p47 = por %p45, %p46
      %p48 = scmp.ne.s32.totalorder %s37, %s38
      %p49 = scmp.eq.s32.totalorder %s17, 0
      %p50 = por %p48, %p49
      %p51 = scmp.ne.s32.totalorder %s37, %s38
      %p52 = scmp.eq.s32.totalorder %s18, 7
      %p53 = por %p51, %p52
      %p55 = scmp.ne.s32.totalorder %s38, %s54
      %p56 = scmp.eq.s32.totalorder %s18, 0
      %p57 = por %p55, %p56
      %s58 = ssub.s32 %s20, %s27
      %p59 = scmp.eq.s32.totalorder %s58, 0
      %s61 = sadd.s32 %s60, 1
      %s62 = scalar_select %p59, %s60, %s61
      %p65 = pneg %p59
      %p66 = scmp.eq.s32.totalorder %s12, 7
      %p67 = por %p65, %p66
      %p68 = scmp.ne.s32.totalorder %s60, %s63
      %p69 = scmp.eq.s32.totalorder %s12, 0
      %p70 = por %p68, %p69
      %p71 = scmp.ne.s32.totalorder %s60, %s63
      %p72 = scmp.eq.s32.totalorder %s17, 7
      %p73 = por %p71, %p72
      %p74 = scmp.ne.s32.totalorder %s63, %s64
      %p75 = scmp.eq.s32.totalorder %s17, 0
      %p76 = por %p74, %p75
      %p77 = scmp.ne.s32.totalorder %s63, %s64
      %p78 = scmp.eq.s32.totalorder %s18, 7
      %p79 = por %p77, %p78
      %p81 = scmp.ne.s32.totalorder %s64, %s80
      %p82 = scmp.eq.s32.totalorder %s18, 0
      %p83 = por %p81, %p82
      %s84 = ssub.s32 %s20, %s27
      %p85 = scmp.eq.s32.totalorder %s84, 0
      %s87 = sadd.s32 %s86, 1
      %s88 = scalar_select %p85, %s86, %s87
      %p91 = pneg %p85
      %p92 = scmp.eq.s32.totalorder %s12, 7
      %p93 = por %p91, %p92
      %p94 = scmp.ne.s32.totalorder %s86, %s89
      %p95 = scmp.eq.s32.totalorder %s12, 0
      %p96 = por %p94, %p95
      %p97 = scmp.ne.s32.totalorder %s86, %s89
      %p98 = scmp.eq.s32.totalorder %s17, 7
      %p99 = por %p97, %p98
      %p100 = scmp.ne.s32.totalorder %s89, %s90
      %p101 = scmp.eq.s32.totalorder %s17, 0
      %p102 = por %p100, %p101
      %p103 = scmp.ne.s32.totalorder %s89, %s90
      %p104 = scmp.eq.s32.totalorder %s18, 7
      %p105 = por %p103, %p104
      %p107 = scmp.ne.s32.totalorder %s90, %s106
      %p108 = scmp.eq.s32.totalorder %s18, 0
      %p109 = por %p107, %p108
      %s110 = ssub.s32 %s19, %s31
      %s111 = ssub.s32 %s20, %s27
      %s112 = sor.u32 %s110, %s111
      %p113 = scmp.eq.s32.totalorder %s112, 0
      %s115 = sadd.s32 %s114, 1
      %s116 = scalar_select %p113, %s114, %s115
      %p119 = pneg %p113
      %p120 = scmp.eq.s32.totalorder %s12, 7
      %p121 = por %p119, %p120
      %p122 = scmp.ne.s32.totalorder %s114, %s117
      %p123 = scmp.eq.s32.totalorder %s12, 0
      %p124 = por %p122, %p123
      %p125 = scmp.ne.s32.totalorder %s114, %s117
      %p126 = scmp.eq.s32.totalorder %s17, 7
      %p127 = por %p125, %p126
      %p128 = scmp.ne.s32.totalorder %s117, %s118
      %p129 = scmp.eq.s32.totalorder %s17, 0
      %p130 = por %p128, %p129
      %p131 = scmp.ne.s32.totalorder %s117, %s118
      %p132 = scmp.eq.s32.totalorder %s18, 7
      %p133 = por %p131, %p132
      %p135 = scmp.ne.s32.totalorder %s118, %s134
      %p136 = scmp.eq.s32.totalorder %s18, 0
      %p137 = por %p135, %p136
      %p138 = scmp.le.s32.totalorder 1, %s12
      %p139 = scmp.lt.s32.totalorder %s12, 9
      %p140 = pnand %p138, %p139
      %p141 = pneg %p140
      // Predicated region
      $region9: #{_conv_bn_jit.1} parent=5 // pred_check
        _
      $region10: #{_conv_bn_jit.1} parent=5 // pred_check_branch
        %143 = sbr.rel (%p140) target = $region12
      $region11: #{_conv_bn_jit.1} parent=5 // pred_region
        %s144 = ssub.s32 %s12, 1
        // Predicated region
        $region13: #{_conv_bn_jit.1} parent=11 // pred_check
          %p145 = pneg %p76
        $region14: #{_conv_bn_jit.1} parent=11 // pred_check_branch
          %147 = sbr.rel (%p145) target = $region16
        $region15: #{_conv_bn_jit.1} parent=11 // pred_region
          %p148 = scmp.lt.s32.totalorder %s22, 0
          %s149 = scalar_select %p148, %s22, 0
          %s150 = smul.addr %s149, 4
          %s151 = scalar_lea.vmem %s1, %s150
        $region16: #{_conv_bn_jit.1} parent=11 // pred_fallthru
          _
        // Predicated region
        $region17: #{_conv_bn_jit.1} parent=11 // pred_check
          %p152 = pneg %p102
        $region18: #{_conv_bn_jit.1} parent=11 // pred_check_branch
          %154 = sbr.rel (%p152) target = $region20
        $region19: #{_conv_bn_jit.1} parent=11 // pred_region
          %p155 = scmp.lt.s32.totalorder %s22, 0
          %s156 = scalar_select %p155, %s22, 0
          %s157 = scalar_lea.vmem %s2, %s156
        $region20: #{_conv_bn_jit.1} parent=11 // pred_fallthru
          _
      $region12: #{_conv_bn_jit.1} parent=5 // pred_fallthru
        _
      %p158 = scmp.lt.s32.totalorder %s12, 8
      // Predicated region
      $region21: #{_conv_bn_jit.1} parent=5 // pred_check
        %p159 = pneg %p158
      $region22: #{_conv_bn_jit.1} parent=5 // pred_check_branch
        %161 = sbr.rel (%p159) target = $region24
      $region23: #{_conv_bn_jit.1} parent=5 // pred_region
        // Predicated region
        $region25: #{_conv_bn_jit.1} parent=23 // pred_check
          %p162 = pneg %p44
        $region26: #{_conv_bn_jit.1} parent=23 // pred_check_branch
          %164 = sbr.rel (%p162) target = $region28
        $region27: #{_conv_bn_jit.1} parent=23 // pred_region
          %s165 = smul.u32 32, %s19
          %p166 = scmp.lt.s32.totalorder %s165, 255
          %s167 = scalar_select %p166, %s165, 255
          %s168 = smul.addr %s167, 2
          %s169 = smul.addr %s168, 4
          %s170 = scalar_lea.vmem %s0, %s169
          %s171 = smul.u32 32, %s19
        $region28: #{_conv_bn_jit.1} parent=23 // pred_fallthru
          _
      $region24: #{_conv_bn_jit.1} parent=5 // pred_fallthru
        _
      %p172 = scmp.le.s32.totalorder 1, %s12
      %p173 = scmp.lt.s32.totalorder %s12, 9
      %p174 = pnand %p172, %p173
      %p175 = pneg %p174
      // Predicated region
      $region29: #{_conv_bn_jit.1} parent=5 // pred_check
        _
      $region30: #{_conv_bn_jit.1} parent=5 // pred_check_branch
        %177 = sbr.rel (%p174) target = $region32
      $region31: #{_conv_bn_jit.1} parent=5 // pred_region
        %s178 = ssub.s32 %s12, 1
        %s179 = smul.u32 32, %s21
        %p180 = scmp.lt.s32.totalorder %s179, 255
        %s181 = scalar_select %p180, %s179, 255
        %s182 = smul.addr %s181, 2
        %s183 = smul.addr %s182, 4
        %s184 = scalar_lea.vmem %s0, %s183
        %p185 = pneg %p50
        %p186 = pneg %p47
        %p187 = scmp.lt.s32.totalorder %s22, 0
        %s188 = scalar_select %p187, %s22, 0
        %s189 = smul.addr %s188, 4
        %s190 = scalar_lea.vmem %s1, %s189
        %p191 = pneg %p76
        %p192 = pneg %p73
        %p193 = scmp.lt.s32.totalorder %s22, 0
        %s194 = scalar_select %p193, %s22, 0
        %s195 = scalar_lea.vmem %s2, %s194
        %p196 = pneg %p102
        %p197 = pneg %p99
        %p198 = pneg %p130
        %p199 = pneg %p127
        %s200 = sand.u32 %s117, 1
        %s201 = scalar_lea.sflag [#allocation3], %s200
        %s202 = sand.u32 %s117, 1
        %s203 = smul.addr %s202, 128
        %s204 = scalar_lea.vmem [#allocation2], %s203
        %s205 = smul.u32 32, %s21
        %p206 = scmp.lt.s32.totalorder %s205, 255
        %s207 = scalar_select %p206, %s205, 255
        %s208 = smul.addr %s207, 2
        %s209 = smul.addr %s208, 4
        %s210 = scalar_lea.vmem %s0, %s209
        %s211 = smul.u32 32, %s21
        %p212 = scmp.lt.s32.totalorder %s22, 0
        %s213 = scalar_select %p212, %s22, 0
        %s214 = smul.addr %s213, 4
        %s215 = scalar_lea.vmem %s1, %s214
        %p216 = scmp.lt.s32.totalorder %s22, 0
        %s217 = scalar_select %p216, %s22, 0
        %s218 = scalar_lea.vmem %s2, %s217
        %s219 = smul.u32 32, %s21
        %v220 = vld [vmem:[%s210] sm:$0xff]
        %v221 = vld [vmem:[%s210 + $0x8] sm:$0xff]
        %v222 = vld [vmem:[%s210 + $0x10] sm:$0xff]
        %v223 = vld [vmem:[%s210 + $0x18] sm:$0xff]
        %v224 = vld [vmem:[%s210 + $0x20] sm:$0xff]
        %v225 = vld [vmem:[%s210 + $0x28] sm:$0xff]
        %v226 = vld [vmem:[%s210 + $0x30] sm:$0xff]
        %v227 = vld [vmem:[%s210 + $0x38] sm:$0xff]
        %v228 = vld [vmem:[%s210 + $0x40] sm:$0xff]
        %v229 = vld [vmem:[%s210 + $0x48] sm:$0xff]
        %v230 = vld [vmem:[%s210 + $0x50] sm:$0xff]
        %v231 = vld [vmem:[%s210 + $0x58] sm:$0xff]
        %v232 = vld [vmem:[%s210 + $0x60] sm:$0xff]
        %v233 = vld [vmem:[%s210 + $0x68] sm:$0xff]
        %v234 = vld [vmem:[%s210 + $0x70] sm:$0xff]
        %v235 = vld [vmem:[%s210 + $0x78] sm:$0xff]
        %v236 = vld [vmem:[%s210 + $0x80] sm:$0xff]
        %v237 = vld [vmem:[%s210 + $0x88] sm:$0xff]
        %v238 = vld [vmem:[%s210 + $0x90] sm:$0xff]
        %v239 = vld [vmem:[%s210 + $0x98] sm:$0xff]
        %v240 = vld [vmem:[%s210 + $0xa0] sm:$0xff]
        %v241 = vld [vmem:[%s210 + $0xa8] sm:$0xff]
        %v242 = vld [vmem:[%s210 + $0xb0] sm:$0xff]
        %v243 = vld [vmem:[%s210 + $0xb8] sm:$0xff]
        %v244 = vld [vmem:[%s210 + $0xc0] sm:$0xff]
        %v245 = vld [vmem:[%s210 + $0xc8] sm:$0xff]
        %v246 = vld [vmem:[%s210 + $0xd0] sm:$0xff]
        %v247 = vld [vmem:[%s210 + $0xd8] sm:$0xff]
        %v248 = vld [vmem:[%s210 + $0xe0] sm:$0xff]
        %v249 = vld [vmem:[%s210 + $0xe8] sm:$0xff]
        %v250 = vld [vmem:[%s210 + $0xf0] sm:$0xff]
        %v251 = vld [vmem:[%s210 + $0xf8] sm:$0xff]
        %v252 = vld [vmem:[%s215] sm:$0xf]
        %v253 = vld [vmem:[%s215 + $0x4] sm:$0xf]
        %v254 = vld [vmem:[%s215 + $0x8] sm:$0xf]
        %v255 = vld [vmem:[%s215 + $0xc] sm:$0xf]
        %v256 = vld [vmem:[%s215 + $0x10] sm:$0xf]
        %v257 = vld [vmem:[%s215 + $0x14] sm:$0xf]
        %v258 = vld [vmem:[%s215 + $0x18] sm:$0xf]
        %v259 = vld [vmem:[%s215 + $0x1c] sm:$0xf]
        %v260 = vld [vmem:[%s215 + $0x20] sm:$0xf]
        %v261 = vld [vmem:[%s215 + $0x24] sm:$0xf]
        %v262 = vld [vmem:[%s215 + $0x28] sm:$0xf]
        %v263 = vld [vmem:[%s215 + $0x2c] sm:$0xf]
        %v264 = vld [vmem:[%s215 + $0x30] sm:$0xf]
        %v265 = vld [vmem:[%s215 + $0x34] sm:$0xf]
        %v266 = vld [vmem:[%s215 + $0x38] sm:$0xf]
        %v267 = vld [vmem:[%s215 + $0x3c] sm:$0xf]
        %v268 = vld [vmem:[%s215 + $0x40] sm:$0xf]
        %v269 = vld [vmem:[%s215 + $0x44] sm:$0xf]
        %v270 = vld [vmem:[%s215 + $0x48] sm:$0xf]
        %v271 = vld [vmem:[%s215 + $0x4c] sm:$0xf]
        %v272 = vld [vmem:[%s215 + $0x50] sm:$0xf]
        %v273 = vld [vmem:[%s215 + $0x54] sm:$0xf]
        %v274 = vld [vmem:[%s215 + $0x58] sm:$0xf]
        %v275 = vld [vmem:[%s215 + $0x5c] sm:$0xf]
        %v276 = vld [vmem:[%s215 + $0x60] sm:$0xf]
        %v277 = vld [vmem:[%s215 + $0x64] sm:$0xf]
        %v278 = vld [vmem:[%s215 + $0x68] sm:$0xf]
        %v279 = vld [vmem:[%s215 + $0x6c] sm:$0xf]
        %v280 = vld [vmem:[%s215 + $0x70] sm:$0xf]
        %v281 = vld [vmem:[%s215 + $0x74] sm:$0xf]
        %v282 = vld [vmem:[%s215 + $0x78] sm:$0xf]
        %v283 = vld [vmem:[%s215 + $0x7c] sm:$0xf]
        %v284 = vld [vmem:[%s218] sm:$0x1]
        %v286 = vperm.slane %v284, 0
        %v320 = vunpack.c.l.b16 %v220
        %v321 = vunpack.c.h.b16 %v220
        %v322 = vunpack.c.l.b16 %v221
        %v323 = vunpack.c.h.b16 %v221
        %v324 = vunpack.c.l.b16 %v222
        %v325 = vunpack.c.h.b16 %v222
        %v326 = vunpack.c.l.b16 %v223
        %v327 = vunpack.c.h.b16 %v223
        %v328 = vunpack.c.l.b16 %v224
        %v329 = vunpack.c.h.b16 %v224
        %v330 = vunpack.c.l.b16 %v225
        %v331 = vunpack.c.h.b16 %v225
        %v332 = vunpack.c.l.b16 %v226
        %v333 = vunpack.c.h.b16 %v226
        %v334 = vunpack.c.l.b16 %v227
        %v335 = vunpack.c.h.b16 %v227
        %v336 = vunpack.c.l.b16 %v228
        %v337 = vunpack.c.h.b16 %v228
        %v338 = vunpack.c.l.b16 %v229
        %v339 = vunpack.c.h.b16 %v229
        %v340 = vunpack.c.l.b16 %v230
        %v341 = vunpack.c.h.b16 %v230
        %v342 = vunpack.c.l.b16 %v231
        %v343 = vunpack.c.h.b16 %v231
        %v344 = vunpack.c.l.b16 %v232
        %v345 = vunpack.c.h.b16 %v232
        %v346 = vunpack.c.l.b16 %v233
        %v347 = vunpack.c.h.b16 %v233
        %v348 = vunpack.c.l.b16 %v234
        %v349 = vunpack.c.h.b16 %v234
        %v350 = vunpack.c.l.b16 %v235
        %v351 = vunpack.c.h.b16 %v235
        %v352 = vunpack.c.l.b16 %v236
        %v353 = vunpack.c.h.b16 %v236
        %v354 = vunpack.c.l.b16 %v237
        %v355 = vunpack.c.h.b16 %v237
        %v356 = vunpack.c.l.b16 %v238
        %v357 = vunpack.c.h.b16 %v238
        %v358 = vunpack.c.l.b16 %v239
        %v359 = vunpack.c.h.b16 %v239
        %v360 = vunpack.c.l.b16 %v240
        %v361 = vunpack.c.h.b16 %v240
        %v362 = vunpack.c.l.b16 %v241
        %v363 = vunpack.c.h.b16 %v241
        %v364 = vunpack.c.l.b16 %v242
        %v365 = vunpack.c.h.b16 %v242
        %v366 = vunpack.c.l.b16 %v243
        %v367 = vunpack.c.h.b16 %v243
        %v368 = vunpack.c.l.b16 %v244
        %v369 = vunpack.c.h.b16 %v244
        %v370 = vunpack.c.l.b16 %v245
        %v371 = vunpack.c.h.b16 %v245
        %v372 = vunpack.c.l.b16 %v246
        %v373 = vunpack.c.h.b16 %v246
        %v374 = vunpack.c.l.b16 %v247
        %v375 = vunpack.c.h.b16 %v247
        %v376 = vunpack.c.l.b16 %v248
        %v377 = vunpack.c.h.b16 %v248
        %v378 = vunpack.c.l.b16 %v249
        %v379 = vunpack.c.h.b16 %v249
        %v380 = vunpack.c.l.b16 %v250
        %v381 = vunpack.c.h.b16 %v250
        %v382 = vunpack.c.l.b16 %v251
        %v383 = vunpack.c.h.b16 %v251
        %v384 = vpack.c.b16 %v322, %v320
        %v385 = vpack.c.b16 %v323, %v321
        %v386 = vpack.c.b16 %v326, %v324
        %v387 = vpack.c.b16 %v327, %v325
        %v388 = vpack.c.b16 %v330, %v328
        %v389 = vpack.c.b16 %v331, %v329
        %v390 = vpack.c.b16 %v334, %v332
        %v391 = vpack.c.b16 %v335, %v333
        %v392 = vpack.c.b16 %v338, %v336
        %v393 = vpack.c.b16 %v339, %v337
        %v394 = vpack.c.b16 %v342, %v340
        %v395 = vpack.c.b16 %v343, %v341
        %v396 = vpack.c.b16 %v346, %v344
        %v397 = vpack.c.b16 %v347, %v345
        %v398 = vpack.c.b16 %v350, %v348
        %v399 = vpack.c.b16 %v351, %v349
        %v400 = vpack.c.b16 %v354, %v352
        %v401 = vpack.c.b16 %v355, %v353
        %v402 = vpack.c.b16 %v358, %v356
        %v403 = vpack.c.b16 %v359, %v357
        %v404 = vpack.c.b16 %v362, %v360
        %v405 = vpack.c.b16 %v363, %v361
        %v406 = vpack.c.b16 %v366, %v364
        %v407 = vpack.c.b16 %v367, %v365
        %v408 = vpack.c.b16 %v370, %v368
        %v409 = vpack.c.b16 %v371, %v369
        %v410 = vpack.c.b16 %v374, %v372
        %v411 = vpack.c.b16 %v375, %v373
        %v412 = vpack.c.b16 %v378, %v376
        %v413 = vpack.c.b16 %v379, %v377
        %v414 = vpack.c.b16 %v382, %v380
        %v415 = vpack.c.b16 %v383, %v381
        %v480 = vunpack.c.l.b16 %v252
        %v481 = vunpack.c.l.b16 %v253
        %v482 = vunpack.c.l.b16 %v254
        %v483 = vunpack.c.l.b16 %v255
        %v484 = vunpack.c.l.b16 %v256
        %v485 = vunpack.c.l.b16 %v257
        %v486 = vunpack.c.l.b16 %v258
        %v487 = vunpack.c.l.b16 %v259
        %v488 = vunpack.c.l.b16 %v260
        %v489 = vunpack.c.l.b16 %v261
        %v490 = vunpack.c.l.b16 %v262
        %v491 = vunpack.c.l.b16 %v263
        %v492 = vunpack.c.l.b16 %v264
        %v493 = vunpack.c.l.b16 %v265
        %v494 = vunpack.c.l.b16 %v266
        %v495 = vunpack.c.l.b16 %v267
        %v496 = vunpack.c.l.b16 %v268
        %v497 = vunpack.c.l.b16 %v269
        %v498 = vunpack.c.l.b16 %v270
        %v499 = vunpack.c.l.b16 %v271
        %v500 = vunpack.c.l.b16 %v272
        %v501 = vunpack.c.l.b16 %v273
        %v502 = vunpack.c.l.b16 %v274
        %v503 = vunpack.c.l.b16 %v275
        %v504 = vunpack.c.l.b16 %v276
        %v505 = vunpack.c.l.b16 %v277
        %v506 = vunpack.c.l.b16 %v278
        %v507 = vunpack.c.l.b16 %v279
        %v508 = vunpack.c.l.b16 %v280
        %v509 = vunpack.c.l.b16 %v281
        %v510 = vunpack.c.l.b16 %v282
        %v511 = vunpack.c.l.b16 %v283
        %v512 = vpack.c.b16 %v481, %v480
        %v513 = vpack.c.b16 %v483, %v482
        %v514 = vpack.c.b16 %v485, %v484
        %v515 = vpack.c.b16 %v487, %v486
        %v516 = vpack.c.b16 %v489, %v488
        %v517 = vpack.c.b16 %v491, %v490
        %v518 = vpack.c.b16 %v493, %v492
        %v519 = vpack.c.b16 %v495, %v494
        %v520 = vpack.c.b16 %v497, %v496
        %v521 = vpack.c.b16 %v499, %v498
        %v522 = vpack.c.b16 %v501, %v500
        %v523 = vpack.c.b16 %v503, %v502
        %v524 = vpack.c.b16 %v505, %v504
        %v525 = vpack.c.b16 %v507, %v506
        %v526 = vpack.c.b16 %v509, %v508
        %v527 = vpack.c.b16 %v511, %v510
        %544 = vmatpush.bf16.msra.mxu0 %v519
        %545 = vmatpush.bf16.msra.mxu0 %v518
        %546 = vmatpush.bf16.msra.mxu0 %v517
        %547 = vmatpush.bf16.msra.mxu0 %v516
        %548 = vmatpush.bf16.msra.mxu0 %v515
        %549 = vmatpush.bf16.msra.mxu0 %v514
        %550 = vmatpush.bf16.msra.mxu0 %v513
        %551 = vmatpush.bf16.msra.mxu0 %v512
        %552 = vmatmul.bf16.gmra.mxu0 %v384
        %v553 = vpop.f32.mrf.mxu0
        %v554 = vadd.f32 %v286, %v553
        %v555 = vpop.f32.mrf.mxu0
        %v556 = vadd.f32 %v286, %v555
        %557 = vmatmul.bf16.gmra.mxu0 %v386
        %v558 = vpop.f32.mrf.mxu0
        %v559 = vadd.f32 %v286, %v558
        %v560 = vpop.f32.mrf.mxu0
        %v561 = vadd.f32 %v286, %v560
        %562 = vmatmul.bf16.gmra.mxu0 %v388
        %v563 = vpop.f32.mrf.mxu0
        %v564 = vadd.f32 %v286, %v563
        %v565 = vpop.f32.mrf.mxu0
        %v566 = vadd.f32 %v286, %v565
        %567 = vmatmul.bf16.gmra.mxu0 %v390
        %v568 = vpop.f32.mrf.mxu0
        %v569 = vadd.f32 %v286, %v568
        %v570 = vpop.f32.mrf.mxu0
        %v571 = vadd.f32 %v286, %v570
        %572 = vmatmul.bf16.gmra.mxu0 %v392
        %v573 = vpop.f32.mrf.mxu0
        %v574 = vadd.f32 %v286, %v573
        %v575 = vpop.f32.mrf.mxu0
        %v576 = vadd.f32 %v286, %v575
        %577 = vmatmul.bf16.gmra.mxu0 %v394
        %v578 = vpop.f32.mrf.mxu0
        %v579 = vadd.f32 %v286, %v578
        %v580 = vpop.f32.mrf.mxu0
        %v581 = vadd.f32 %v286, %v580
        %582 = vmatmul.bf16.gmra.mxu0 %v396
        %v583 = vpop.f32.mrf.mxu0
        %v584 = vadd.f32 %v286, %v583
        %v585 = vpop.f32.mrf.mxu0
        %v586 = vadd.f32 %v286, %v585
        %587 = vmatmul.bf16.gmra.mxu0 %v398
        %v588 = vpop.f32.mrf.mxu0
        %v589 = vadd.f32 %v286, %v588
        %v590 = vpop.f32.mrf.mxu0
        %v591 = vadd.f32 %v286, %v590
        %592 = vmatmul.bf16.gmra.mxu0 %v400
        %v593 = vpop.f32.mrf.mxu0
        %v594 = vadd.f32 %v286, %v593
        %v595 = vpop.f32.mrf.mxu0
        %v596 = vadd.f32 %v286, %v595
        %597 = vmatmul.bf16.gmra.mxu0 %v402
        %v598 = vpop.f32.mrf.mxu0
        %v599 = vadd.f32 %v286, %v598
        %v600 = vpop.f32.mrf.mxu0
        %v601 = vadd.f32 %v286, %v600
        %602 = vmatmul.bf16.gmra.mxu0 %v404
        %v603 = vpop.f32.mrf.mxu0
        %v604 = vadd.f32 %v286, %v603
        %v605 = vpop.f32.mrf.mxu0
        %v606 = vadd.f32 %v286, %v605
        %607 = vmatmul.bf16.gmra.mxu0 %v406
        %v608 = vpop.f32.mrf.mxu0
        %v609 = vadd.f32 %v286, %v608
        %v610 = vpop.f32.mrf.mxu0
        %v611 = vadd.f32 %v286, %v610
        %612 = vmatmul.bf16.gmra.mxu0 %v408
        %v613 = vpop.f32.mrf.mxu0
        %v614 = vadd.f32 %v286, %v613
        %v615 = vpop.f32.mrf.mxu0
        %v616 = vadd.f32 %v286, %v615
        %617 = vmatmul.bf16.gmra.mxu0 %v410
        %v618 = vpop.f32.mrf.mxu0
        %v619 = vadd.f32 %v286, %v618
        %v620 = vpop.f32.mrf.mxu0
        %v621 = vadd.f32 %v286, %v620
        %622 = vmatmul.bf16.gmra.mxu0 %v412
        %v623 = vpop.f32.mrf.mxu0
        %v624 = vadd.f32 %v286, %v623
        %v625 = vpop.f32.mrf.mxu0
        %v626 = vadd.f32 %v286, %v625
        %627 = vmatmul.bf16.gmra.mxu0 %v414
        %v628 = vpop.f32.mrf.mxu0
        %v629 = vadd.f32 %v286, %v628
        %v630 = vpop.f32.mrf.mxu0
        %v631 = vadd.f32 %v286, %v630
        %632 = vdwg.mxu0
        %633 = vmatpush.bf16.msra.mxu0 %v527
        %634 = vmatpush.bf16.msra.mxu0 %v526
        %635 = vmatpush.bf16.msra.mxu0 %v525
        %636 = vmatpush.bf16.msra.mxu0 %v524
        %637 = vmatpush.bf16.msra.mxu0 %v523
        %638 = vmatpush.bf16.msra.mxu0 %v522
        %639 = vmatpush.bf16.msra.mxu0 %v521
        %640 = vmatpush.bf16.msra.mxu0 %v520
        %641 = vmatmul.bf16.gmra.mxu0 %v385
        %v642 = vpop.f32.mrf.mxu0
        %v643 = vadd.f32 %v554, %v642
        %v644 = vpop.f32.mrf.mxu0
        %v645 = vadd.f32 %v556, %v644
        %646 = vmatmul.bf16.gmra.mxu0 %v387
        %v647 = vpop.f32.mrf.mxu0
        %v648 = vadd.f32 %v559, %v647
        %v649 = vpop.f32.mrf.mxu0
        %v650 = vadd.f32 %v561, %v649
        %651 = vmatmul.bf16.gmra.mxu0 %v389
        %v652 = vpop.f32.mrf.mxu0
        %v653 = vadd.f32 %v564, %v652
        %v654 = vpop.f32.mrf.mxu0
        %v655 = vadd.f32 %v566, %v654
        %656 = vmatmul.bf16.gmra.mxu0 %v391
        %v657 = vpop.f32.mrf.mxu0
        %v658 = vadd.f32 %v569, %v657
        %v659 = vpop.f32.mrf.mxu0
        %v660 = vadd.f32 %v571, %v659
        %661 = vmatmul.bf16.gmra.mxu0 %v393
        %v662 = vpop.f32.mrf.mxu0
        %v663 = vadd.f32 %v574, %v662
        %v664 = vpop.f32.mrf.mxu0
        %v665 = vadd.f32 %v576, %v664
        %666 = vmatmul.bf16.gmra.mxu0 %v395
        %v667 = vpop.f32.mrf.mxu0
        %v668 = vadd.f32 %v579, %v667
        %v669 = vpop.f32.mrf.mxu0
        %v670 = vadd.f32 %v581, %v669
        %671 = vmatmul.bf16.gmra.mxu0 %v397
        %v672 = vpop.f32.mrf.mxu0
        %v673 = vadd.f32 %v584, %v672
        %v674 = vpop.f32.mrf.mxu0
        %v675 = vadd.f32 %v586, %v674
        %676 = vmatmul.bf16.gmra.mxu0 %v399
        %v677 = vpop.f32.mrf.mxu0
        %v678 = vadd.f32 %v589, %v677
        %v679 = vpop.f32.mrf.mxu0
        %v680 = vadd.f32 %v591, %v679
        %681 = vmatmul.bf16.gmra.mxu0 %v401
        %v682 = vpop.f32.mrf.mxu0
        %v683 = vadd.f32 %v594, %v682
        %v684 = vpop.f32.mrf.mxu0
        %v685 = vadd.f32 %v596, %v684
        %686 = vmatmul.bf16.gmra.mxu0 %v403
        %v687 = vpop.f32.mrf.mxu0
        %v688 = vadd.f32 %v599, %v687
        %v689 = vpop.f32.mrf.mxu0
        %v690 = vadd.f32 %v601, %v689
        %691 = vmatmul.bf16.gmra.mxu0 %v405
        %v692 = vpop.f32.mrf.mxu0
        %v693 = vadd.f32 %v604, %v692
        %v694 = vpop.f32.mrf.mxu0
        %v695 = vadd.f32 %v606, %v694
        %696 = vmatmul.bf16.gmra.mxu0 %v407
        %v697 = vpop.f32.mrf.mxu0
        %v698 = vadd.f32 %v609, %v697
        %v699 = vpop.f32.mrf.mxu0
        %v700 = vadd.f32 %v611, %v699
        %701 = vmatmul.bf16.gmra.mxu0 %v409
        %v702 = vpop.f32.mrf.mxu0
        %v703 = vadd.f32 %v614, %v702
        %v704 = vpop.f32.mrf.mxu0
        %v705 = vadd.f32 %v616, %v704
        %706 = vmatmul.bf16.gmra.mxu0 %v411
        %v707 = vpop.f32.mrf.mxu0
        %v708 = vadd.f32 %v619, %v707
        %v709 = vpop.f32.mrf.mxu0
        %v710 = vadd.f32 %v621, %v709
        %711 = vmatmul.bf16.gmra.mxu0 %v413
        %v712 = vpop.f32.mrf.mxu0
        %v713 = vadd.f32 %v624, %v712
        %v714 = vpop.f32.mrf.mxu0
        %v715 = vadd.f32 %v626, %v714
        %716 = vmatmul.bf16.gmra.mxu0 %v415
        %v717 = vpop.f32.mrf.mxu0
        %v718 = vadd.f32 %v629, %v717
        %v719 = vpop.f32.mrf.mxu0
        %v720 = vadd.f32 %v631, %v719
        %721 = vdwg.mxu0
        %v722 = vmax.f32 %v643, 0.0
        %v723 = vmax.f32 %v645, 0.0
        %v724 = vmax.f32 %v648, 0.0
        %v725 = vmax.f32 %v650, 0.0
        %v726 = vmax.f32 %v653, 0.0
        %v727 = vmax.f32 %v655, 0.0
        %v728 = vmax.f32 %v658, 0.0
        %v729 = vmax.f32 %v660, 0.0
        %v730 = vmax.f32 %v663, 0.0
        %v731 = vmax.f32 %v665, 0.0
        %v732 = vmax.f32 %v668, 0.0
        %v733 = vmax.f32 %v670, 0.0
        %v734 = vmax.f32 %v673, 0.0
        %v735 = vmax.f32 %v675, 0.0
        %v736 = vmax.f32 %v678, 0.0
        %v737 = vmax.f32 %v680, 0.0
        %v738 = vmax.f32 %v683, 0.0
        %v739 = vmax.f32 %v685, 0.0
        %v740 = vmax.f32 %v688, 0.0
        %v741 = vmax.f32 %v690, 0.0
        %v742 = vmax.f32 %v693, 0.0
        %v743 = vmax.f32 %v695, 0.0
        %v744 = vmax.f32 %v698, 0.0
        %v745 = vmax.f32 %v700, 0.0
        %v746 = vmax.f32 %v703, 0.0
        %v747 = vmax.f32 %v705, 0.0
        %v748 = vmax.f32 %v708, 0.0
        %v749 = vmax.f32 %v710, 0.0
        %v750 = vmax.f32 %v713, 0.0
        %v751 = vmax.f32 %v715, 0.0
        %v752 = vmax.f32 %v718, 0.0
        %v753 = vmax.f32 %v720, 0.0
        %v754 = vpack.c.bf16 %v722, %v722
        %v755 = vpack.c.bf16 %v723, %v723
        %v756 = vpack.c.bf16 %v724, %v724
        %v757 = vpack.c.bf16 %v725, %v725
        %v758 = vpack.c.bf16 %v726, %v726
        %v759 = vpack.c.bf16 %v727, %v727
        %v760 = vpack.c.bf16 %v728, %v728
        %v761 = vpack.c.bf16 %v729, %v729
        %v762 = vpack.c.bf16 %v730, %v730
        %v763 = vpack.c.bf16 %v731, %v731
        %v764 = vpack.c.bf16 %v732, %v732
        %v765 = vpack.c.bf16 %v733, %v733
        %v766 = vpack.c.bf16 %v734, %v734
        %v767 = vpack.c.bf16 %v735, %v735
        %v768 = vpack.c.bf16 %v736, %v736
        %v769 = vpack.c.bf16 %v737, %v737
        %v770 = vpack.c.bf16 %v738, %v738
        %v771 = vpack.c.bf16 %v739, %v739
        %v772 = vpack.c.bf16 %v740, %v740
        %v773 = vpack.c.bf16 %v741, %v741
        %v774 = vpack.c.bf16 %v742, %v742
        %v775 = vpack.c.bf16 %v743, %v743
        %v776 = vpack.c.bf16 %v744, %v744
        %v777 = vpack.c.bf16 %v745, %v745
        %v778 = vpack.c.bf16 %v746, %v746
        %v779 = vpack.c.bf16 %v747, %v747
        %v780 = vpack.c.bf16 %v748, %v748
        %v781 = vpack.c.bf16 %v749, %v749
        %v782 = vpack.c.bf16 %v750, %v750
        %v783 = vpack.c.bf16 %v751, %v751
        %v784 = vpack.c.bf16 %v752, %v752
        %v785 = vpack.c.bf16 %v753, %v753
        %vm786 = vcmask 519168
        %787 = vst.msk [vmem:[%s204] sm:$0xf] %vm786, %v754
        %788 = vst.msk [vmem:[%s204 + $0x4] sm:$0xf] %vm786, %v755
        %789 = vst.msk [vmem:[%s204 + $0x8] sm:$0xf] %vm786, %v756
        %790 = vst.msk [vmem:[%s204 + $0xc] sm:$0xf] %vm786, %v757
        %791 = vst.msk [vmem:[%s204 + $0x10] sm:$0xf] %vm786, %v758
        %792 = vst.msk [vmem:[%s204 + $0x14] sm:$0xf] %vm786, %v759
        %793 = vst.msk [vmem:[%s204 + $0x18] sm:$0xf] %vm786, %v760
        %794 = vst.msk [vmem:[%s204 + $0x1c] sm:$0xf] %vm786, %v761
        %795 = vst.msk [vmem:[%s204 + $0x20] sm:$0xf] %vm786, %v762
        %796 = vst.msk [vmem:[%s204 + $0x24] sm:$0xf] %vm786, %v763
        %797 = vst.msk [vmem:[%s204 + $0x28] sm:$0xf] %vm786, %v764
        %798 = vst.msk [vmem:[%s204 + $0x2c] sm:$0xf] %vm786, %v765
        %799 = vst.msk [vmem:[%s204 + $0x30] sm:$0xf] %vm786, %v766
        %800 = vst.msk [vmem:[%s204 + $0x34] sm:$0xf] %vm786, %v767
        %801 = vst.msk [vmem:[%s204 + $0x38] sm:$0xf] %vm786, %v768
        %802 = vst.msk [vmem:[%s204 + $0x3c] sm:$0xf] %vm786, %v769
        %803 = vst.msk [vmem:[%s204 + $0x40] sm:$0xf] %vm786, %v770
        %804 = vst.msk [vmem:[%s204 + $0x44] sm:$0xf] %vm786, %v771
        %805 = vst.msk [vmem:[%s204 + $0x48] sm:$0xf] %vm786, %v772
        %806 = vst.msk [vmem:[%s204 + $0x4c] sm:$0xf] %vm786, %v773
        %807 = vst.msk [vmem:[%s204 + $0x50] sm:$0xf] %vm786, %v774
        %808 = vst.msk [vmem:[%s204 + $0x54] sm:$0xf] %vm786, %v775
        %809 = vst.msk [vmem:[%s204 + $0x58] sm:$0xf] %vm786, %v776
        %810 = vst.msk [vmem:[%s204 + $0x5c] sm:$0xf] %vm786, %v777
        %811 = vst.msk [vmem:[%s204 + $0x60] sm:$0xf] %vm786, %v778
        %812 = vst.msk [vmem:[%s204 + $0x64] sm:$0xf] %vm786, %v779
        %813 = vst.msk [vmem:[%s204 + $0x68] sm:$0xf] %vm786, %v780
        %814 = vst.msk [vmem:[%s204 + $0x6c] sm:$0xf] %vm786, %v781
        %815 = vst.msk [vmem:[%s204 + $0x70] sm:$0xf] %vm786, %v782
        %816 = vst.msk [vmem:[%s204 + $0x74] sm:$0xf] %vm786, %v783
        %817 = vst.msk [vmem:[%s204 + $0x78] sm:$0xf] %vm786, %v784
        %818 = vst.msk [vmem:[%s204 + $0x7c] sm:$0xf] %vm786, %v785
        %s819 = sand.u32 %s117, 1
        %s820 = scalar_lea.sflag [#allocation3], %s819
        %s821 = sand.u32 %s117, 1
        %s822 = smul.addr %s821, 128
        %s823 = scalar_lea.vmem [#allocation2], %s822
        // Predicated region
        $region33: #{_conv_bn_jit.1} parent=31 // pred_check
          %p824 = pneg %p127
        $region34: #{_conv_bn_jit.1} parent=31 // pred_check_branch
          %826 = sbr.rel (%p824) target = $region36
        $region35: #{_conv_bn_jit.1} parent=31 // pred_region
          %s827 = smul.u32 32, %s21
          %829 = vsyncadd %s820, 0
          %s830 = sadd.s32 %s22, %s827
          %s831 = smul.addr %s830, 4
          %s832 = scalar_lea.hbm %s3, %s831
          %s833 = sshll.u32 %s823, 4
          %s834 = int_to_ptr.vmem [resolvable:$true] %s833
          %s835 = sshll.u32 %s832, 4
          %s836 = int_to_ptr.hbm [resolvable:$true] %s835
          %841 = dma.vmem_to_hbm [thread:$0]  %s834, 2048, %s836, %s820, 64, 64, 4
        $region36: #{_conv_bn_jit.1} parent=31 // pred_fallthru
          _
      $region32: #{_conv_bn_jit.1} parent=5 // pred_fallthru
        _
      %p842 = scmp.le.s32.totalorder 2, %s12
      // Predicated region
      $region37: #{_conv_bn_jit.1} parent=5 // pred_check
        %p843 = pneg %p842
      $region38: #{_conv_bn_jit.1} parent=5 // pred_check_branch
        %845 = sbr.rel (%p843) target = $region40
      $region39: #{_conv_bn_jit.1} parent=5 // pred_region
        %s846 = ssub.s32 %s12, 2
        // Predicated region
        $region41: #{_conv_bn_jit.1} parent=39 // pred_check
          %p847 = pneg %p133
        $region42: #{_conv_bn_jit.1} parent=39 // pred_check_branch
          %849 = sbr.rel (%p847) target = $region44
        $region43: #{_conv_bn_jit.1} parent=39 // pred_region
          %s850 = sand.u32 %s118, 1
          %s851 = scalar_lea.sflag [#allocation3], %s850
          %s852 = sand.u32 %s118, 1
          %s853 = smul.addr %s852, 128
          %s854 = scalar_lea.vmem [#allocation2], %s853
          %856 = dma.done %s851, 2048
        $region44: #{_conv_bn_jit.1} parent=39 // pred_fallthru
          _
      $region40: #{_conv_bn_jit.1} parent=5 // pred_fallthru
        _
    $region6: #{_conv_bn_jit.1} parent=1 // loop_footer
      %s16 = sadd.s32 1, %s12
    $region7: #{_conv_bn_jit.1} parent=1 // loop_footer_branch
      %11 = sbr.rel target = $region3
    $region8: #{_conv_bn_jit.1} parent=1 // loop_exit
      _
    %857 = vsyncpa [#allocation3], 1
    %s858 = scalar_lea.sflag [#allocation3], 1
    %859 = vsyncpa %s858, 1

</llo_original>
